<compile_context>
chip_gen: v7x
topology: tpu7x:2x2x1
jax: 0.10.0
libtpu: 0.0.40
codegen_flags: <defaults>
</compile_context>

<pallas_src>
import functools

import jax
import jax.numpy as jnp
import numpy as np
from jax.experimental import pallas as pl
from jax.experimental.pallas import tpu as pltpu


# ----------------------------- Pallas kernels ------------------------------ #

def _conv_relu_stats_kernel(w_ref, cols_ref, b_ref, out_ref, sum_ref, sq_ref,
                            *, m_total, tm):
    """out[Cout, tm] = relu(w[Cout,K] @ cols[K,tm] + b[Cout,1]); accumulate
    per-channel sum / sum-of-squares (masking padded columns) into the
    VMEM-resident (constant-index) stats outputs."""
    i = pl.program_id(0)

    @pl.when(i == 0)
    def _():
        sum_ref[...] = jnp.zeros_like(sum_ref)
        sq_ref[...] = jnp.zeros_like(sq_ref)

    acc = jnp.dot(w_ref[...], cols_ref[...], preferred_element_type=jnp.float32)
    y = jnp.maximum(acc + b_ref[...], 0.0)
    out_ref[...] = y

    # Mask out columns beyond the true M (padding added for tile alignment).
    col = jax.lax.broadcasted_iota(jnp.int32, y.shape, 1) + i * tm
    yv = jnp.where(col < m_total, y, 0.0)
    sum_ref[...] += jnp.sum(yv, axis=1, keepdims=True)
    sq_ref[...] += jnp.sum(yv * yv, axis=1, keepdims=True)


def _conv_relu_kernel(w_ref, cols_ref, b_ref, out_ref):
    acc = jnp.dot(w_ref[...], cols_ref[...], preferred_element_type=jnp.float32)
    out_ref[...] = jnp.maximum(acc + b_ref[...], 0.0)


# ------------------------------ Pallas wrappers ----------------------------- #

def _round_up(x, m):
    return (x + m - 1) // m * m


def conv_relu_with_stats(w_mat, cols, bias, *, tm_max=512,
                         compute_dtype=jnp.float32):
    """w_mat: [Cout, K], cols: [K, M], bias: [Cout, 1].
    Returns (relu(w@cols+b): [Cout, M], per-channel sum [Cout], sumsq [Cout])."""
    Cout, K = w_mat.shape
    Kc, M = cols.shape
    assert Kc == K
    tm = min(tm_max, _round_up(M, 128))
    Mp = _round_up(M, tm)
    if Mp != M:
        cols = jnp.pad(cols, ((0, 0), (0, Mp - M)))

    kernel = functools.partial(_conv_relu_stats_kernel, m_total=M, tm=tm)
    out, s_, sq_ = pl.pallas_call(
        kernel,
        out_shape=(jax.ShapeDtypeStruct((Cout, Mp), jnp.float32),
                   jax.ShapeDtypeStruct((Cout, 1), jnp.float32),
                   jax.ShapeDtypeStruct((Cout, 1), jnp.float32)),
        grid_spec=pltpu.PrefetchScalarGridSpec(
            num_scalar_prefetch=0,
            grid=(Mp // tm,),
            in_specs=[
                pl.BlockSpec((Cout, K), lambda i: (0, 0)),
                pl.BlockSpec((K, tm), lambda i: (0, i)),
                pl.BlockSpec((Cout, 1), lambda i: (0, 0)),
            ],
            out_specs=(
                pl.BlockSpec((Cout, tm), lambda i: (0, i)),
                pl.BlockSpec((Cout, 1), lambda i: (0, 0)),   # stats: accumulator
                pl.BlockSpec((Cout, 1), lambda i: (0, 0)),
            ),
        ),
        # Stats outputs are accumulators over the M axis -> must be "arbitrary".
        compiler_params=pltpu.CompilerParams(dimension_semantics=("arbitrary",)),
    )(w_mat.astype(compute_dtype), cols.astype(compute_dtype), bias)
    return out[:, :M], s_[:, 0], sq_[:, 0]


def conv_relu(w_mat, cols, bias, *, tm_max=512, compute_dtype=jnp.float32):
    """w_mat: [Cout, K], cols: [K, M], bias: [Cout, 1] -> relu(w@cols+b): [Cout, M]."""
    Cout, K = w_mat.shape
    Kc, M = cols.shape
    assert Kc == K
    tm = min(tm_max, _round_up(M, 128))
    Mp = _round_up(M, tm)
    if Mp != M:
        cols = jnp.pad(cols, ((0, 0), (0, Mp - M)))

    out = pl.pallas_call(
        _conv_relu_kernel,
        out_shape=jax.ShapeDtypeStruct((Cout, Mp), jnp.float32),
        grid_spec=pltpu.PrefetchScalarGridSpec(
            num_scalar_prefetch=0,
            grid=(Mp // tm,),
            in_specs=[
                pl.BlockSpec((Cout, K), lambda i: (0, 0)),
                pl.BlockSpec((K, tm), lambda i: (0, i)),
                pl.BlockSpec((Cout, 1), lambda i: (0, 0)),
            ],
            out_specs=pl.BlockSpec((Cout, tm), lambda i: (0, i)),
        ),
        compiler_params=pltpu.CompilerParams(dimension_semantics=("parallel",)),
    )(w_mat.astype(compute_dtype), cols.astype(compute_dtype), bias)
    return out[:, :M]


# ------------------------------- glue (JAX) -------------------------------- #

def im2col_cf(x_cnhw, k, s, p):
    """Channel-first im2col: x [C, N, H, W] -> cols [C*k*k, N*Ho*Wo]
    with K-order (cin, kh, kw) matching PyTorch weight.reshape(Cout, -1)."""
    C, N, H, W = x_cnhw.shape
    xp = jnp.pad(x_cnhw, ((0, 0), (0, 0), (p, p), (p, p)))
    Ho = (H + 2 * p - k) // s + 1
    Wo = (W + 2 * p - k) // s + 1
    patches = [xp[:, :, di:di + s * Ho:s, dj:dj + s * Wo:s]
               for di in range(k) for dj in range(k)]        # each [C, N, Ho, Wo]
    cols = jnp.stack(patches, axis=1)                         # [C, k*k, N, Ho, Wo]
    return cols.reshape(C * k * k, N * Ho * Wo), Ho, Wo


def conv_block_2_forward(x_nchw, params):
    k1, s1, p1 = params["k1"], params["s1"], params["p1"]
    k2, s2, p2 = params["k2"], params["s2"], params["p2"]
    N = x_nchw.shape[0]

    # conv_1 + ReLU with fused BN-statistics epilogue.
    x_cf = jnp.transpose(x_nchw.astype(jnp.float32), (1, 0, 2, 3))   # [Cin, N, H, W]
    cols1, H1, W1 = im2col_cf(x_cf, k1, s1, p1)
    M1 = N * H1 * W1
    w1_mat = params["w1"].reshape(params["w1"].shape[0], -1)          # [Cmid, K1]
    x1T, ssum, ssq = conv_relu_with_stats(w1_mat, cols1,
                                          params["b1"].reshape(-1, 1))

    # BatchNorm2d (training-mode batch statistics, biased variance, eps=1e-5).
    mean = ssum / M1
    var = jnp.maximum(ssq / M1 - mean * mean, 0.0)
    scale = params["bn_gamma"] * jax.lax.rsqrt(var + 1e-5)
    shift = params["bn_beta"] - mean * scale

    # Exact BN affine applied in the wrapper; XLA fuses it into conv2's im2col
    # (no separate Pallas pass / HBM round trip for the BN apply).
    Cmid = w1_mat.shape[0]
    z = (x1T.reshape(Cmid, N, H1, W1) * scale[:, None, None, None]
         + shift[:, None, None, None])

    # conv_2 + ReLU
    cols2, H2, W2 = im2col_cf(z, k2, s2, p2)
    w2_mat = params["w2"].reshape(params["w2"].shape[0], -1)          # [Cout, K2]
    out2T = conv_relu(w2_mat, cols2, params["b2"].reshape(-1, 1))     # [Cout, N*H2*W2]

    Cout = w2_mat.shape[0]
    out = out2T.reshape(Cout, N, H2, W2)
    return jnp.transpose(out, (1, 0, 2, 3))                            # NCHW


# ------------------------------- reference --------------------------------- #

def reference_forward(x_nchw, params):
    x = jnp.transpose(x_nchw, (0, 2, 3, 1)).astype(jnp.float32)
    k1, s1, p1 = params["k1"], params["s1"], params["p1"]
    k2, s2, p2 = params["k2"], params["s2"], params["p2"]

    def conv(x, w_oihw, b, s, p):
        w_hwio = jnp.transpose(w_oihw, (2, 3, 1, 0))
        y = jax.lax.conv_general_dilated(
            x, w_hwio, window_strides=(s, s), padding=((p, p), (p, p)),
            dimension_numbers=("NHWC", "HWIO", "NHWC"))
        return y + b.reshape(1, 1, 1, -1)

    x1 = jnp.maximum(conv(x, params["w1"], params["b1"], s1, p1), 0.0)
    mean = jnp.mean(x1, axis=(0, 1, 2), keepdims=True)
    var = jnp.mean((x1 - mean) ** 2, axis=(0, 1, 2), keepdims=True)
    x1 = (x1 - mean) * jax.lax.rsqrt(var + 1e-5)
    x1 = x1 * params["bn_gamma"].reshape(1, 1, 1, -1) + params["bn_beta"].reshape(1, 1, 1, -1)
    x2 = jnp.maximum(conv(x1, params["w2"], params["b2"], s2, p2), 0.0)
    return jnp.transpose(x2, (0, 3, 1, 2))


# --------------------------------- main ------------------------------------ #

if __name__ == "__main__":
    N, ch_in, ch_mid, ch_out = 2, 4, 8, 8
    H = W = 16
    k1 = k2 = 3
    s1 = s2 = 1
    p1 = p2 = 1

    key = jax.random.PRNGKey(0)
    kx, kw1, kb1, kw2, kb2, kg, kb = jax.random.split(key, 7)

    params = {
        "w1": 0.1 * jax.random.normal(kw1, (ch_mid, ch_in, k1, k1), jnp.float32),
        "b1": 0.1 * jax.random.normal(kb1, (ch_mid,), jnp.float32),
        "w2": 0.1 * jax.random.normal(kw2, (ch_out, ch_mid, k2, k2), jnp.float32),
        "b2": 0.1 * jax.random.normal(kb2, (ch_out,), jnp.float32),
        "bn_gamma": 1.0 + 0.1 * jax.random.normal(kg, (ch_mid,), jnp.float32),
        "bn_beta": 0.1 * jax.random.normal(kb, (ch_mid,), jnp.float32),
        "k1": k1, "s1": s1, "p1": p1,
        "k2": k2, "s2": s2, "p2": p2,
    }

    x = jax.random.normal(kx, (N, ch_in, H, W), jnp.float32)

    out = conv_block_2_forward(x, params)
    out = jax.block_until_ready(out)

    ref = jax.block_until_ready(reference_forward(x, params))
    np.testing.assert_allclose(np.asarray(out), np.asarray(ref),
                               rtol=1e-2, atol=1e-2)
    assert out.shape == (N, ch_out, H, W)
    print("KERNEL_OK")
</pallas_src>

<mosaic_0001>
module attributes {stable_mosaic.version = 11 : i64} {
  func.func @_conv_relu_stats_kernel(%arg0: i32, %arg1: memref<8x36xf32, #tpu.memory_space<vmem>>, %arg2: memref<36x512xf32, #tpu.memory_space<vmem>>, %arg3: memref<8x1xf32, #tpu.memory_space<vmem>>, %arg4: memref<8x512xf32, #tpu.memory_space<vmem>>, %arg5: memref<8x1xf32, #tpu.memory_space<vmem>>, %arg6: memref<8x1xf32, #tpu.memory_space<vmem>>) attributes {dimension_semantics = [#tpu.dimension_semantics<arbitrary>], iteration_bounds = array<i64: 1>, scalar_prefetch = 0 : i64, scratch_operands = 0 : i64, tpu.core_type = #tpu.core_type<tc>, window_params = [{pipeline_mode = #tpu.pipeline_mode<synchronous>, transform_indices = @transform_0, window_bounds = array<i64: 8, 36>}, {transform_indices = @transform_1, window_bounds = array<i64: 36, 512>}, {pipeline_mode = #tpu.pipeline_mode<synchronous>, transform_indices = @transform_2, window_bounds = array<i64: 8, 1>}, {transform_indices = @transform_3, window_bounds = array<i64: 8, 512>}, {pipeline_mode = #tpu.pipeline_mode<synchronous>, transform_indices = @transform_4, window_bounds = array<i64: 8, 1>}, {pipeline_mode = #tpu.pipeline_mode<synchronous>, transform_indices = @transform_5, window_bounds = array<i64: 8, 1>}]} {
    %c0_i32 = arith.constant 0 : i32
    %0 = arith.cmpi eq, %arg0, %c0_i32 : i32
    %1 = arith.extui %0 : i1 to i32
    %c0_i32_0 = arith.constant 0 : i32
    %2 = arith.cmpi ne, %1, %c0_i32_0 : i32
    scf.if %2 {
      %cst_21 = arith.constant 0.000000e+00 : f32
      %31 = vector.broadcast %cst_21 : f32 to vector<8x1xf32>
      %c0_22 = arith.constant 0 : index
      %c0_23 = arith.constant 0 : index
      %32 = vector.load %arg5[%c0_22, %c0_23] : memref<8x1xf32, #tpu.memory_space<vmem>>, vector<8x1xf32>
      tpu.vector_store %arg5[%c0_22, %c0_23], %31 {strides = array<i32>} : memref<8x1xf32, #tpu.memory_space<vmem>>, vector<8x1xf32>,
      %cst_24 = arith.constant 0.000000e+00 : f32
      %33 = vector.broadcast %cst_24 : f32 to vector<8x1xf32>
      %c0_25 = arith.constant 0 : index
      %c0_26 = arith.constant 0 : index
      %34 = vector.load %arg6[%c0_25, %c0_26] : memref<8x1xf32, #tpu.memory_space<vmem>>, vector<8x1xf32>
      tpu.vector_store %arg6[%c0_25, %c0_26], %33 {strides = array<i32>} : memref<8x1xf32, #tpu.memory_space<vmem>>, vector<8x1xf32>,
    } else {
    }
    %c0 = arith.constant 0 : index
    %c0_1 = arith.constant 0 : index
    %3 = vector.load %arg1[%c0, %c0_1] : memref<8x36xf32, #tpu.memory_space<vmem>>, vector<8x36xf32>
    %c0_2 = arith.constant 0 : index
    %c0_3 = arith.constant 0 : index
    %4 = vector.load %arg2[%c0_2, %c0_3] : memref<36x512xf32, #tpu.memory_space<vmem>>, vector<36x512xf32>
    %cst = arith.constant dense<0.000000e+00> : vector<8x512xf32>
    %5 = tpu.matmul %3, %4, %cst {dimension_numbers = #tpu.dot_dimension_numbers<[1], [0], [0], [1], [0, 0, 1, 1], [], []>} : vector<8x36xf32>, vector<36x512xf32>, vector<8x512xf32> -> vector<8x512xf32>
    %c0_4 = arith.constant 0 : index
    %c0_5 = arith.constant 0 : index
    %6 = vector.load %arg3[%c0_4, %c0_5] : memref<8x1xf32, #tpu.memory_space<vmem>>, vector<8x1xf32>
    %7 = vector.broadcast %6 : vector<8x1xf32> to vector<8x512xf32>
    %8 = arith.addf %5, %7 : vector<8x512xf32>
    %cst_6 = arith.constant 0.000000e+00 : f32
    %9 = vector.broadcast %cst_6 : f32 to vector<8x512xf32>
    %10 = arith.maximumf %8, %9 : vector<8x512xf32>
    %c0_7 = arith.constant 0 : index
    %c0_8 = arith.constant 0 : index
    %11 = vector.load %arg4[%c0_7, %c0_8] : memref<8x512xf32, #tpu.memory_space<vmem>>, vector<8x512xf32>
    tpu.vector_store %arg4[%c0_7, %c0_8], %10 {strides = array<i32>} : memref<8x512xf32, #tpu.memory_space<vmem>>, vector<8x512xf32>,
    %12 = tpu.iota {dimensions = array<i32: 1>} : vector<8x512xi32>
    %c512_i32 = arith.constant 512 : i32
    %13 = arith.muli %arg0, %c512_i32 : i32
    %14 = vector.broadcast %13 : i32 to vector<8x512xi32>
    %15 = arith.addi %12, %14 : vector<8x512xi32>
    %c512_i32_9 = arith.constant 512 : i32
    %16 = vector.broadcast %c512_i32_9 : i32 to vector<8x512xi32>
    %17 = arith.cmpi slt, %15, %16 : vector<8x512xi32>
    %cst_10 = arith.constant 0.000000e+00 : f32
    %18 = vector.broadcast %cst_10 : f32 to vector<8x512xf32>
    %19 = arith.select %17, %10, %18 : vector<8x512xi1>, vector<8x512xf32>
    %c0_11 = arith.constant 0 : index
    %c0_12 = arith.constant 0 : index
    %20 = vector.load %arg5[%c0_11, %c0_12] : memref<8x1xf32, #tpu.memory_space<vmem>>, vector<8x1xf32>
    %cst_13 = arith.constant dense<0.000000e+00> : vector<8xf32>
    %21 = vector.multi_reduction <add>, %19, %cst_13 [1] : vector<8x512xf32> to vector<8xf32>
    %22 = vector.shape_cast %21 : vector<8xf32> to vector<8x1xf32>
    %23 = arith.addf %20, %22 : vector<8x1xf32>
    %c0_14 = arith.constant 0 : index
    %c0_15 = arith.constant 0 : index
    %24 = vector.load %arg5[%c0_14, %c0_15] : memref<8x1xf32, #tpu.memory_space<vmem>>, vector<8x1xf32>
    tpu.vector_store %arg5[%c0_14, %c0_15], %23 {strides = array<i32>} : memref<8x1xf32, #tpu.memory_space<vmem>>, vector<8x1xf32>,
    %c0_16 = arith.constant 0 : index
    %c0_17 = arith.constant 0 : index
    %25 = vector.load %arg6[%c0_16, %c0_17] : memref<8x1xf32, #tpu.memory_space<vmem>>, vector<8x1xf32>
    %26 = arith.mulf %19, %19 : vector<8x512xf32>
    %cst_18 = arith.constant dense<0.000000e+00> : vector<8xf32>
    %27 = vector.multi_reduction <add>, %26, %cst_18 [1] : vector<8x512xf32> to vector<8xf32>
    %28 = vector.shape_cast %27 : vector<8xf32> to vector<8x1xf32>
    %29 = arith.addf %25, %28 : vector<8x1xf32>
    %c0_19 = arith.constant 0 : index
    %c0_20 = arith.constant 0 : index
    %30 = vector.load %arg6[%c0_19, %c0_20] : memref<8x1xf32, #tpu.memory_space<vmem>>, vector<8x1xf32>
    tpu.vector_store %arg6[%c0_19, %c0_20], %29 {strides = array<i32>} : memref<8x1xf32, #tpu.memory_space<vmem>>, vector<8x1xf32>,
    return
  }
  func.func @transform_0(%arg0: i32) -> (i32, i32) {
    %c0_i32 = arith.constant 0 : i32
    %c0_i32_0 = arith.constant 0 : i32
    %c0_i32_1 = arith.constant 0 : i32
    return %c0_i32, %c0_i32_0 : i32, i32
  }
  func.func @transform_1(%arg0: i32) -> (i32, i32) {
    %c0_i32 = arith.constant 0 : i32
    %c0_i32_0 = arith.constant 0 : i32
    return %c0_i32, %arg0 : i32, i32
  }
  func.func @transform_2(%arg0: i32) -> (i32, i32) {
    %c0_i32 = arith.constant 0 : i32
    %c0_i32_0 = arith.constant 0 : i32
    %c0_i32_1 = arith.constant 0 : i32
    return %c0_i32, %c0_i32_0 : i32, i32
  }
  func.func @transform_3(%arg0: i32) -> (i32, i32) {
    %c0_i32 = arith.constant 0 : i32
    %c0_i32_0 = arith.constant 0 : i32
    return %c0_i32, %arg0 : i32, i32
  }
  func.func @transform_4(%arg0: i32) -> (i32, i32) {
    %c0_i32 = arith.constant 0 : i32
    %c0_i32_0 = arith.constant 0 : i32
    %c0_i32_1 = arith.constant 0 : i32
    return %c0_i32, %c0_i32_0 : i32, i32
  }
  func.func @transform_5(%arg0: i32) -> (i32, i32) {
    %c0_i32 = arith.constant 0 : i32
    %c0_i32_0 = arith.constant 0 : i32
    %c0_i32_1 = arith.constant 0 : i32
    return %c0_i32, %c0_i32_0 : i32, i32
  }
}

</mosaic_0001>

<llo_original>
// kernel: tpu_custom_call.1
$region0: #{tpu_custom_call.1}
  #allocation0 [shape = 'u32[]', space=smem, size = 0x4, offset = 0x4, fixed_abs, tag = 'smem constant byte address 0x4 - core index']
  #allocation1 [shape = 'u32[144,128]{1,0:T(1,128)}', space=vmem, size = 0x12000, scoped, tag = 'internal scratch']
  %s0 = inlined_call_operand.vmem [shape: f32[8,36], index: 0, kind: input, shape index: {}]
  %s1 = inlined_call_operand.hbm [shape: f32[36,512], index: 1, kind: input, shape index: {}]
  %s2 = inlined_call_operand.vmem [shape: f32[8,1], index: 2, kind: input, shape index: {}]
  %s3 = inlined_call_operand.hbm [shape: f32[8,512], index: 3, kind: output, shape index: {0}]
  %s4 = inlined_call_operand.vmem [shape: f32[8,1], index: 4, kind: output, shape index: {1}]
  %s5 = inlined_call_operand.vmem [shape: f32[8,1], index: 5, kind: output, shape index: {2}]
  %6 = xla_tuple %s3, %s4, %s5
  %s7 = sld [smem:[#allocation0]]
  $region46: #{tpu_custom_call.1} parent=0
    _
  %s9 = ssub.s32 1, %s7
  %s10 = scalar_select 0, %s9, %s7
  $region1: #{tpu_custom_call.1} parent=0
    #allocation2 [shape = 'u8[81920]{0}', space=vmem, size = 0x14000, scoped, tag = 'input window, operand 1, single buffered']
    #allocation3 [shape = 's32[1]{0}', space=sflag, size = 0x4, scoped, tag = 'scoped memory for tpu_custom_call.1']
    #allocation4 [shape = 's32[1]{0}', space=sflag, size = 0x4, scoped, tag = 'scoped memory for tpu_custom_call.1']
    #allocation5 [shape = 'u8[16384]{0}', space=vmem, size = 0x4000, scoped, tag = 'output window, operand 0, single buffered']
    %11 = vsyncpa [#allocation3], 0
    %12 = vsyncpa [#allocation4], 0
    // Predicated region
    $region2: #{tpu_custom_call.1} parent=1 // pred_check
      _
    $region3: #{tpu_custom_call.1} parent=1 // pred_check_branch
      %14 = sbr.rel (0) target = $region5
    $region4: #{tpu_custom_call.1} parent=1 // pred_region
      _
    $region5: #{tpu_custom_call.1} parent=1 // pred_fallthru
      _
    // Predicated region
    $region6: #{tpu_custom_call.1} parent=1 // pred_check
      _
    $region7: #{tpu_custom_call.1} parent=1 // pred_check_branch
      %16 = sbr.rel (0) target = $region9
    $region8: #{tpu_custom_call.1} parent=1 // pred_region
      %s18 = ssub.s32 2560, 2560
      %19 = vsyncadd [#allocation3], %s18
      %s20 = sshll.u32 [#allocation2], 4
      %s21 = int_to_ptr.vmem [resolvable:$true] %s20
      %26 = dma.hbm_to_vmem [thread:$0]  %s1, 2560, %s21, [#allocation3], 512, 512, 32
    $region9: #{tpu_custom_call.1} parent=1 // pred_fallthru
      _
    // Predicated region
    $region10: #{tpu_custom_call.1} parent=1 // pred_check
      _
    $region11: #{tpu_custom_call.1} parent=1 // pred_check_branch
      %28 = sbr.rel (0) target = $region13
    $region12: #{tpu_custom_call.1} parent=1 // pred_region
      _
    $region13: #{tpu_custom_call.1} parent=1 // pred_fallthru
      _
    // Predicated region
    $region14: #{tpu_custom_call.1} parent=1 // pred_check
      _
    $region15: #{tpu_custom_call.1} parent=1 // pred_check_branch
      %30 = sbr.rel (0) target = $region17
    $region16: #{tpu_custom_call.1} parent=1 // pred_region
      %31 = dma.done [#allocation3], 2560
    $region17: #{tpu_custom_call.1} parent=1 // pred_fallthru
      _
    %p32 = scmp.eq.s32.totalorder 0, 0
    // Predicated region
    $region18: #{tpu_custom_call.1} parent=1 // pred_check
      %p33 = pneg %p32
    $region19: #{tpu_custom_call.1} parent=1 // pred_check_branch
      %35 = sbr.rel (%p33) target = $region21
    $region20: #{tpu_custom_call.1} parent=1 // pred_region
      %vm36 = vcmask 7168
      %37 = vst.msk [vmem:[%s4] sm:$0xff] %vm36, 0.0
      %38 = vst.msk [vmem:[%s5] sm:$0xff] %vm36, 0.0
    $region21: #{tpu_custom_call.1} parent=1 // pred_fallthru
      _
    %v39 = vld [vmem:[%s0] sm:$0xff]
    %v40 = vld [vmem:[#allocation2] sm:$0xff]
    %v41 = vld [vmem:[#allocation2 + $0x8] sm:$0xff]
    %v42 = vld [vmem:[#allocation2 + $0x10] sm:$0xff]
    %v43 = vld [vmem:[#allocation2 + $0x18] sm:$0xff]
    %v44 = vld [vmem:[#allocation2 + $0x20] sm:$0xff]
    %v45 = vld [vmem:[#allocation2 + $0x28] sm:$0xff]
    %v46 = vld [vmem:[#allocation2 + $0x30] sm:$0xff]
    %v47 = vld [vmem:[#allocation2 + $0x38] sm:$0xff]
    %v48 = vld [vmem:[#allocation2 + $0x40] sm:$0xff]
    %v49 = vld [vmem:[#allocation2 + $0x48] sm:$0xff]
    %v50 = vld [vmem:[#allocation2 + $0x50] sm:$0xff]
    %v51 = vld [vmem:[#allocation2 + $0x58] sm:$0xff]
    %v52 = vld [vmem:[#allocation2 + $0x60] sm:$0xff]
    %v53 = vld [vmem:[#allocation2 + $0x68] sm:$0xff]
    %v54 = vld [vmem:[#allocation2 + $0x70] sm:$0xff]
    %v55 = vld [vmem:[#allocation2 + $0x78] sm:$0xff]
    %v56 = vld [vmem:[#allocation2 + $0x80] sm:$0xf]
    %v57 = vld [vmem:[#allocation2 + $0x88] sm:$0xf]
    %v58 = vld [vmem:[#allocation2 + $0x90] sm:$0xf]
    %v59 = vld [vmem:[#allocation2 + $0x98] sm:$0xf]
    %v60 = vld [vmem:[%s2] sm:$0xff]
    %62 = vset.pattern.permute.xlu0 0
    %63 = vperm.xlu0 %62, %v60
    %v64 = vpop.permute.xlu0 %63
    %vm66 = vcmask 293888
    %v68 = vsel %vm66, %v39, 0
    %vm70 = vcmask 1043456
    %v72 = vsel %vm70, %v56, 0
    %v75 = vsel %vm70, %v57, 0
    %v78 = vsel %vm70, %v58, 0
    %v81 = vsel %vm70, %v59, 0
    %83 = vmatprep.subr.mxu0 %v41
    %84 = vmatpush1.msra.mxu0 %v40
    %85 = vmatprep.subr.mxu0 %v45
    %86 = vmatpush1.msra.mxu0 %v44
    %87 = vmatprep.subr.mxu0 %v49
    %88 = vmatpush1.msra.mxu0 %v48
    %89 = vmatprep.subr.mxu0 %v53
    %90 = vmatpush1.msra.mxu0 %v52
    %91 = vmatprep.subr.mxu0 %v75
    %92 = vmatpush1.msra.mxu0 %v72
    %93 = vmatprep.subr.mxu0 0.0
    %94 = vmatpush1.msra.mxu0 0.0
    %95 = vmatprep.subr.mxu0 0.0
    %96 = vmatpush1.msra.mxu0 0.0
    %97 = vmatprep.subr.mxu0 0.0
    %98 = vmatpush1.msra.mxu0 0.0
    %99 = vmatprep.subr.mxu0 0.0
    %100 = vmatpush1.msra.mxu0 0.0
    %101 = vmatprep.subr.mxu0 0.0
    %102 = vmatpush1.msra.mxu0 0.0
    %103 = vmatprep.subr.mxu0 0.0
    %104 = vmatpush1.msra.mxu0 0.0
    %105 = vmatprep.subr.mxu0 0.0
    %106 = vmatpush1.msra.mxu0 0.0
    %107 = vmatprep.subr.mxu0 0.0
    %108 = vmatpush1.msra.mxu0 0.0
    %109 = vmatprep.subr.mxu0 0.0
    %110 = vmatpush1.msra.mxu0 0.0
    %111 = vmatprep.subr.mxu0 0.0
    %112 = vmatpush1.msra.mxu0 0.0
    %113 = vmatprep.subr.mxu0 0.0
    %114 = vmatpush1.msra.mxu0 0.0
    %115 = vmatprep.subr.mxu0 0.0
    %116 = vmatpush1.msra.mxu0 0.0
    %117 = vmatprep.subr.mxu0 0.0
    %118 = vmatpush1.msra.mxu0 0.0
    %119 = vmatprep.subr.mxu0 0.0
    %120 = vmatpush1.msra.mxu0 0.0
    %121 = vmatprep.subr.mxu0 0.0
    %122 = vmatpush1.msra.mxu0 0.0
    %123 = vmatprep.subr.mxu0 0.0
    %124 = vmatpush1.msra.mxu0 0.0
    %125 = vmatprep.subr.mxu0 0.0
    %126 = vmatpush1.msra.mxu0 0.0
    %127 = vmatprep.subr.mxu0 0.0
    %128 = vmatpush1.msra.mxu0 0.0
    %129 = vmatprep.subr.mxu0 0.0
    %130 = vmatpush1.msra.mxu0 0.0
    %131 = vmatprep.subr.mxu0 0.0
    %132 = vmatpush1.msra.mxu0 0.0
    %133 = vmatprep.subr.mxu0 0.0
    %134 = vmatpush1.msra.mxu0 0.0
    %135 = vmatprep.subr.mxu0 0.0
    %136 = vmatpush1.msra.mxu0 0.0
    %137 = vmatprep.subr.mxu0 0.0
    %138 = vmatpush1.msra.mxu0 0.0
    %139 = vmatprep.subr.mxu0 0.0
    %140 = vmatpush1.msra.mxu0 0.0
    %141 = vmatprep.subr.mxu0 0.0
    %142 = vmatpush1.msra.mxu0 0.0
    %143 = vmatprep.subr.mxu0 0.0
    %144 = vmatpush1.msra.mxu0 0.0
    %145 = vmatprep.subr.mxu0 0.0
    %146 = vmatpush1.msra.mxu0 0.0
    %147 = vmatprep.mubr.f32.mxu0 0.0
    %148 = vmatmul.mubr.f32.gmra.mrb[0].mxu0 %v68
    %v149 = vpop.f32.mrb[0].mxu0
    %v150 = vadd.f32 %v64, %v149
    %v151 = vpop.f32.mrb[0].mxu0
    %v152 = vadd.f32 %v64, %v151
    %153 = vdwg.mxu0
    %154 = vmatprep.subr.mxu0 %v43
    %155 = vmatpush1.msra.mxu0 %v42
    %156 = vmatprep.subr.mxu0 %v47
    %157 = vmatpush1.msra.mxu0 %v46
    %158 = vmatprep.subr.mxu0 %v51
    %159 = vmatpush1.msra.mxu0 %v50
    %160 = vmatprep.subr.mxu0 %v55
    %161 = vmatpush1.msra.mxu0 %v54
    %162 = vmatprep.subr.mxu0 %v81
    %163 = vmatpush1.msra.mxu0 %v78
    %164 = vmatprep.subr.mxu0 0.0
    %165 = vmatpush1.msra.mxu0 0.0
    %166 = vmatprep.subr.mxu0 0.0
    %167 = vmatpush1.msra.mxu0 0.0
    %168 = vmatprep.subr.mxu0 0.0
    %169 = vmatpush1.msra.mxu0 0.0
    %170 = vmatprep.subr.mxu0 0.0
    %171 = vmatpush1.msra.mxu0 0.0
    %172 = vmatprep.subr.mxu0 0.0
    %173 = vmatpush1.msra.mxu0 0.0
    %174 = vmatprep.subr.mxu0 0.0
    %175 = vmatpush1.msra.mxu0 0.0
    %176 = vmatprep.subr.mxu0 0.0
    %177 = vmatpush1.msra.mxu0 0.0
    %178 = vmatprep.subr.mxu0 0.0
    %179 = vmatpush1.msra.mxu0 0.0
    %180 = vmatprep.subr.mxu0 0.0
    %181 = vmatpush1.msra.mxu0 0.0
    %182 = vmatprep.subr.mxu0 0.0
    %183 = vmatpush1.msra.mxu0 0.0
    %184 = vmatprep.subr.mxu0 0.0
    %185 = vmatpush1.msra.mxu0 0.0
    %186 = vmatprep.subr.mxu0 0.0
    %187 = vmatpush1.msra.mxu0 0.0
    %188 = vmatprep.subr.mxu0 0.0
    %189 = vmatpush1.msra.mxu0 0.0
    %190 = vmatprep.subr.mxu0 0.0
    %191 = vmatpush1.msra.mxu0 0.0
    %192 = vmatprep.subr.mxu0 0.0
    %193 = vmatpush1.msra.mxu0 0.0
    %194 = vmatprep.subr.mxu0 0.0
    %195 = vmatpush1.msra.mxu0 0.0
    %196 = vmatprep.subr.mxu0 0.0
    %197 = vmatpush1.msra.mxu0 0.0
    %198 = vmatprep.subr.mxu0 0.0
    %199 = vmatpush1.msra.mxu0 0.0
    %200 = vmatprep.subr.mxu0 0.0
    %201 = vmatpush1.msra.mxu0 0.0
    %202 = vmatprep.subr.mxu0 0.0
    %203 = vmatpush1.msra.mxu0 0.0
    %204 = vmatprep.subr.mxu0 0.0
    %205 = vmatpush1.msra.mxu0 0.0
    %206 = vmatprep.subr.mxu0 0.0
    %207 = vmatpush1.msra.mxu0 0.0
    %208 = vmatprep.subr.mxu0 0.0
    %209 = vmatpush1.msra.mxu0 0.0
    %210 = vmatprep.subr.mxu0 0.0
    %211 = vmatpush1.msra.mxu0 0.0
    %212 = vmatprep.subr.mxu0 0.0
    %213 = vmatpush1.msra.mxu0 0.0
    %214 = vmatprep.subr.mxu0 0.0
    %215 = vmatpush1.msra.mxu0 0.0
    %216 = vmatprep.subr.mxu0 0.0
    %217 = vmatpush1.msra.mxu0 0.0
    %218 = vmatprep.mubr.f32.mxu0 0.0
    %219 = vmatmul.mubr.f32.gmra.mrb[0].mxu0 %v68
    %v220 = vpop.f32.mrb[0].mxu0
    %v221 = vadd.f32 %v64, %v220
    %v222 = vpop.f32.mrb[0].mxu0
    %v223 = vadd.f32 %v64, %v222
    %224 = vdwg.mxu0
    %v225 = vmax.f32 %v150, 0.0
    %v226 = vmax.f32 %v152, 0.0
    %v227 = vmax.f32 %v221, 0.0
    %v228 = vmax.f32 %v223, 0.0
    %229 = vst [vmem:[#allocation5] sm:$0xff] %v225
    %230 = vst [vmem:[#allocation5 + $0x8] sm:$0xff] %v226
    %231 = vst [vmem:[#allocation5 + $0x10] sm:$0xff] %v227
    %232 = vst [vmem:[#allocation5 + $0x18] sm:$0xff] %v228
    %v233 = vlaneseq
    %v234 = vand.u32 %v233, 127
    %v235 = vadd.s32 %v234, 128
    %v236 = vadd.s32 %v234, 256
    %v237 = vadd.s32 %v234, 384
    %s238 = smul.u32 0, 512
    %v239 = vstv %s238
    %v240 = vadd.s32 %v234, %v239
    %v241 = vadd.s32 %v235, %v239
    %v242 = vadd.s32 %v236, %v239
    %v243 = vadd.s32 %v237, %v239
    %vm244 = vcmp.lt.s32.totalorder %v240, 512
    %vm245 = vcmp.lt.s32.totalorder %v241, 512
    %vm246 = vcmp.lt.s32.totalorder %v242, 512
    %vm247 = vcmp.lt.s32.totalorder %v243, 512
    %v248 = vsel %vm244, %v225, 0.0
    %v249 = vsel %vm245, %v226, 0.0
    %v250 = vsel %vm246, %v227, 0.0
    %v251 = vsel %vm247, %v228, 0.0
    %v252 = vld [vmem:[%s4] sm:$0xff]
    %v253 = vadd.f32 %v248, %v249
    %v254 = vadd.f32 %v253, %v250
    %v255 = vadd.f32 %v254, %v251
    %256 = vadd.xlane.f32.xlu0 %v255
    %v257 = vpop.xlane.xlu0 %256
    %v258 = vadd.f32 %v252, %v257
    %vm259 = vcmask 7168
    %260 = vst.msk [vmem:[%s4] sm:$0xff] %vm259, %v258
    %v261 = vld [vmem:[%s5] sm:$0xff]
    %v262 = vmul.f32 %v248, %v248
    %v263 = vmul.f32 %v249, %v249
    %v264 = vmul.f32 %v250, %v250
    %v265 = vmul.f32 %v251, %v251
    %v266 = vadd.f32 %v262, %v263
    %v267 = vadd.f32 %v266, %v264
    %v268 = vadd.f32 %v267, %v265
    %269 = vadd.xlane.f32.xlu0 %v268
    %v270 = vpop.xlane.xlu0 %269
    %v271 = vadd.f32 %v261, %v270
    %272 = vst.msk [vmem:[%s5] sm:$0xff] %vm259, %v271
    // Predicated region
    $region22: #{tpu_custom_call.1} parent=1 // pred_check
      _
    $region23: #{tpu_custom_call.1} parent=1 // pred_check_branch
      %274 = sbr.rel (0) target = $region25
    $region24: #{tpu_custom_call.1} parent=1 // pred_region
      %s276 = ssub.s32 512, 512
      %277 = vsyncadd [#allocation4], %s276
      %s279 = sshll.u32 [#allocation5], 4
      %s280 = int_to_ptr.vmem [resolvable:$true] %s279
      %282 = dma.vmem_to_hbm [thread:$0]  %s280, 512, %s3, [#allocation4]
    $region25: #{tpu_custom_call.1} parent=1 // pred_fallthru
      _
    // Predicated region
    $region26: #{tpu_custom_call.1} parent=1 // pred_check
      _
    $region27: #{tpu_custom_call.1} parent=1 // pred_check_branch
      %284 = sbr.rel (0) target = $region29
    $region28: #{tpu_custom_call.1} parent=1 // pred_region
      _
    $region29: #{tpu_custom_call.1} parent=1 // pred_fallthru
      _
    // Predicated region
    $region30: #{tpu_custom_call.1} parent=1 // pred_check
      _
    $region31: #{tpu_custom_call.1} parent=1 // pred_check_branch
      %286 = sbr.rel (0) target = $region33
    $region32: #{tpu_custom_call.1} parent=1 // pred_region
      _
    $region33: #{tpu_custom_call.1} parent=1 // pred_fallthru
      _
    // Predicated region
    $region34: #{tpu_custom_call.1} parent=1 // pred_check
      _
    $region35: #{tpu_custom_call.1} parent=1 // pred_check_branch
      %288 = sbr.rel (0) target = $region37
    $region36: #{tpu_custom_call.1} parent=1 // pred_region
      %289 = dma.done [#allocation4], 512
    $region37: #{tpu_custom_call.1} parent=1 // pred_fallthru
      _
    // Predicated region
    $region38: #{tpu_custom_call.1} parent=1 // pred_check
      _
    $region39: #{tpu_custom_call.1} parent=1 // pred_check_branch
      %291 = sbr.rel (0) target = $region41
    $region40: #{tpu_custom_call.1} parent=1 // pred_region
      _
    $region41: #{tpu_custom_call.1} parent=1 // pred_fallthru
      _
    // Predicated region
    $region42: #{tpu_custom_call.1} parent=1 // pred_check
      _
    $region43: #{tpu_custom_call.1} parent=1 // pred_check_branch
      %293 = sbr.rel (0) target = $region45
    $region44: #{tpu_custom_call.1} parent=1 // pred_region
      _
    $region45: #{tpu_custom_call.1} parent=1 // pred_fallthru
      _
    %294 = vsyncpa [#allocation3], 1
    %295 = vsyncpa [#allocation4], 1

</llo_original>
